<compile_context>
chip_gen: v7x
topology: tpu7x:2x2x1
jax: 0.10.0
libtpu: 0.0.40
codegen_flags: <defaults>
</compile_context>

<pallas_src>
import numpy as np

import jax
import jax.numpy as jnp
from jax.experimental import pallas as pl
from jax.experimental.pallas import tpu as pltpu


def autoencoder_kernel(xT_ref, w1_ref, b1_ref, w2_ref, b2_ref, outT_ref):
    xT = xT_ref[...]                                     # (D_in, TB), bf16
    # Encoder: Linear(input_dim -> encoding_dim) + ReLU (f32 accumulation on MXU)
    h = jnp.dot(w1_ref[...], xT, preferred_element_type=jnp.float32)   # (E, TB)
    h = jnp.maximum(h + b1_ref[...], 0.0)
    # Decoder: Linear(encoding_dim -> input_dim) + Sigmoid
    y = jnp.dot(w2_ref[...], h.astype(w2_ref.dtype),
                preferred_element_type=jnp.float32)                    # (D_in, TB)
    y = y + b2_ref[...]
    # sigmoid = 1 / (1 + exp(-y)); exp on EUP, approx reciprocal on the vrcp slot.
    outT_ref[...] = pl.reciprocal(1.0 + jnp.exp(-y), approx=True).astype(outT_ref.dtype)


def _choose_batch_tile(batch):
    """Largest convenient lane tile. Multiples of 128 when possible; otherwise
    fall back to the full batch so block_shape == full array dim (8,128 rule)."""
    if batch % 128 != 0:
        return batch
    for tb in (2048, 1024, 512, 256, 128):
        if batch % tb == 0:
            return tb
    return batch


def autoencoder_forward(x, w1, b1, w2, b2, *,
                        compute_dtype=jnp.bfloat16, out_dtype=jnp.float32):
    """Forward pass equivalent to the PyTorch Autoencoder.

    x : (B, D_in) float32
    w1: (E, D_in),  b1: (E,)     -- encoder nn.Linear (PyTorch layout)
    w2: (D_in, E),  b2: (D_in,)  -- decoder nn.Linear (PyTorch layout)
    returns: (B, D_in)
    """
    B, D_in = x.shape
    E = w1.shape[0]
    TB = _choose_batch_tile(B)
    grid = (pl.cdiv(B, TB),)

    # Layout plumbing only (no compute hoisted out of the kernel):
    # batch onto the lane axis; matmul operands in bf16; biases stay f32.
    xT = x.T.astype(compute_dtype)                       # (D_in, B)
    w1c = w1.astype(compute_dtype)                       # (E, D_in)
    w2c = w2.astype(compute_dtype)                       # (D_in, E)
    b1c = b1.reshape(E, 1).astype(jnp.float32)           # (E, 1)
    b2c = b2.reshape(D_in, 1).astype(jnp.float32)        # (D_in, 1)

    c_size = np.dtype(compute_dtype).itemsize
    o_size = np.dtype(out_dtype).itemsize
    cost = pl.CostEstimate(
        flops=4 * B * D_in * E,                          # two dots, 2*M*N*K each
        transcendentals=B * D_in,                        # exp in the sigmoid
        bytes_accessed=int(B * D_in * (c_size + o_size)
                           + 2 * D_in * E * c_size
                           + (D_in + E) * 4),
    )

    outT = pl.pallas_call(
        autoencoder_kernel,
        out_shape=jax.ShapeDtypeStruct((D_in, B), out_dtype),
        grid=grid,
        in_specs=[
            pl.BlockSpec((D_in, TB), lambda i: (0, i)),  # x^T: tiled on batch/lanes
            pl.BlockSpec((E, D_in), lambda i: (0, 0)),   # W1: resident in VMEM
            pl.BlockSpec((E, 1), lambda i: (0, 0)),      # b1: resident
            pl.BlockSpec((D_in, E), lambda i: (0, 0)),   # W2: resident
            pl.BlockSpec((D_in, 1), lambda i: (0, 0)),   # b2: resident
        ],
        out_specs=pl.BlockSpec((D_in, TB), lambda i: (0, i)),
        compiler_params=pltpu.CompilerParams(
            dimension_semantics=("parallel",),           # rows independent; megacore on v7x
            vmem_limit_bytes=32 * 1024 * 1024,           # explicit; safe on v7x (64 MiB)
        ),
        cost_estimate=cost,
    )(xT, w1c, b1c, w2c, b2c)

    return outT.T                                        # back to (B, D_in)


if __name__ == "__main__":
    encoding_dim = 6
    input_dim = 16

    key = jax.random.PRNGKey(0)
    k1, k2, k3, k4, kx_small, kx_tiled = jax.random.split(key, 6)

    # PyTorch nn.Linear-style init: U(-1/sqrt(fan_in), 1/sqrt(fan_in)),
    # weights stored (out_features, in_features) exactly as nn.Linear does.
    bound1 = 1.0 / float(np.sqrt(input_dim))
    w1 = jax.random.uniform(k1, (encoding_dim, input_dim), jnp.float32, -bound1, bound1)
    b1 = jax.random.uniform(k2, (encoding_dim,), jnp.float32, -bound1, bound1)
    bound2 = 1.0 / float(np.sqrt(encoding_dim))
    w2 = jax.random.uniform(k3, (input_dim, encoding_dim), jnp.float32, -bound2, bound2)
    b2 = jax.random.uniform(k4, (input_dim,), jnp.float32, -bound2, bound2)

    def reference(x):
        h = jnp.maximum(x @ w1.T + b1, 0.0)
        return jax.nn.sigmoid(h @ w2.T + b2)

    fwd = jax.jit(autoencoder_forward)

    # Small run (module-scale shapes) + a batch that exercises the tiled grid
    # (384 -> TB=128, 3 grid steps with resident weights).
    for batch, kx in ((8, kx_small), (384, kx_tiled)):
        x = jax.random.uniform(kx, (batch, input_dim), dtype=jnp.float32)
        out = fwd(x, w1, b1, w2, b2)
        jax.block_until_ready(out)
        ref = reference(x)
        assert out.shape == ref.shape
        err = float(jnp.max(jnp.abs(out - ref)))
        # bf16 matmul operands + approx reciprocal -> relaxed tolerance.
        assert jnp.allclose(out, ref, atol=2e-2, rtol=2e-2), (
            f"mismatch vs reference at batch={batch}: max abs err={err}")

    print("KERNEL_OK")
</pallas_src>

<mosaic_0001>
module attributes {stable_mosaic.version = 11 : i64} {
  func.func @autoencoder_kernel(%arg0: i32, %arg1: memref<16x8xbf16, #tpu.memory_space<vmem>>, %arg2: memref<6x16xbf16, #tpu.memory_space<vmem>>, %arg3: memref<6x1xf32, #tpu.memory_space<vmem>>, %arg4: memref<16x6xbf16, #tpu.memory_space<vmem>>, %arg5: memref<16x1xf32, #tpu.memory_space<vmem>>, %arg6: memref<16x8xf32, #tpu.memory_space<vmem>>) attributes {dimension_semantics = [#tpu.dimension_semantics<parallel>], iteration_bounds = array<i64: 1>, scalar_prefetch = 0 : i64, scratch_operands = 0 : i64, tpu.core_type = #tpu.core_type<tc>, window_params = [{transform_indices = @transform_0, window_bounds = array<i64: 16, 8>}, {pipeline_mode = #tpu.pipeline_mode<synchronous>, transform_indices = @transform_1, window_bounds = array<i64: 6, 16>}, {pipeline_mode = #tpu.pipeline_mode<synchronous>, transform_indices = @transform_2, window_bounds = array<i64: 6, 1>}, {pipeline_mode = #tpu.pipeline_mode<synchronous>, transform_indices = @transform_3, window_bounds = array<i64: 16, 6>}, {pipeline_mode = #tpu.pipeline_mode<synchronous>, transform_indices = @transform_4, window_bounds = array<i64: 16, 1>}, {transform_indices = @transform_5, window_bounds = array<i64: 16, 8>}]} {
    %c0 = arith.constant 0 : index
    %c0_0 = arith.constant 0 : index
    %0 = vector.load %arg1[%c0, %c0_0] : memref<16x8xbf16, #tpu.memory_space<vmem>>, vector<16x8xbf16>
    %c0_1 = arith.constant 0 : index
    %c0_2 = arith.constant 0 : index
    %1 = vector.load %arg2[%c0_1, %c0_2] : memref<6x16xbf16, #tpu.memory_space<vmem>>, vector<6x16xbf16>
    %cst = arith.constant dense<0.000000e+00> : vector<6x8xf32>
    %2 = tpu.matmul %1, %0, %cst {dimension_numbers = #tpu.dot_dimension_numbers<[1], [0], [0], [1], [0, 0, 1, 1], [], []>} : vector<6x16xbf16>, vector<16x8xbf16>, vector<6x8xf32> -> vector<6x8xf32>
    %c0_3 = arith.constant 0 : index
    %c0_4 = arith.constant 0 : index
    %3 = vector.load %arg3[%c0_3, %c0_4] : memref<6x1xf32, #tpu.memory_space<vmem>>, vector<6x1xf32>
    %4 = vector.broadcast %3 : vector<6x1xf32> to vector<6x8xf32>
    %5 = arith.addf %2, %4 : vector<6x8xf32>
    %cst_5 = arith.constant 0.000000e+00 : f32
    %6 = vector.broadcast %cst_5 : f32 to vector<6x8xf32>
    %7 = arith.maximumf %5, %6 : vector<6x8xf32>
    %c0_6 = arith.constant 0 : index
    %c0_7 = arith.constant 0 : index
    %8 = vector.load %arg4[%c0_6, %c0_7] : memref<16x6xbf16, #tpu.memory_space<vmem>>, vector<16x6xbf16>
    %9 = arith.truncf %7 : vector<6x8xf32> to vector<6x8xbf16>
    %cst_8 = arith.constant dense<0.000000e+00> : vector<16x8xf32>
    %10 = tpu.matmul %8, %9, %cst_8 {dimension_numbers = #tpu.dot_dimension_numbers<[1], [0], [0], [1], [0, 0, 1, 1], [], []>} : vector<16x6xbf16>, vector<6x8xbf16>, vector<16x8xf32> -> vector<16x8xf32>
    %c0_9 = arith.constant 0 : index
    %c0_10 = arith.constant 0 : index
    %11 = vector.load %arg5[%c0_9, %c0_10] : memref<16x1xf32, #tpu.memory_space<vmem>>, vector<16x1xf32>
    %12 = vector.broadcast %11 : vector<16x1xf32> to vector<16x8xf32>
    %13 = arith.addf %10, %12 : vector<16x8xf32>
    %cst_11 = arith.constant 0.000000e+00 : f32
    %14 = vector.broadcast %cst_11 : f32 to vector<16x8xf32>
    %15 = arith.subf %14, %13 : vector<16x8xf32>
    %16 = math.exp %15 : vector<16x8xf32>
    %cst_12 = arith.constant 1.000000e+00 : f32
    %17 = vector.broadcast %cst_12 : f32 to vector<16x8xf32>
    %18 = arith.addf %17, %16 : vector<16x8xf32>
    %19 = tpu.reciprocal %18 {approx = true} : vector<16x8xf32> -> vector<16x8xf32>
    %c0_13 = arith.constant 0 : index
    %c0_14 = arith.constant 0 : index
    %20 = vector.load %arg6[%c0_13, %c0_14] : memref<16x8xf32, #tpu.memory_space<vmem>>, vector<16x8xf32>
    tpu.vector_store %arg6[%c0_13, %c0_14], %19 {strides = array<i32>} : memref<16x8xf32, #tpu.memory_space<vmem>>, vector<16x8xf32>,
    return
  }
  func.func @transform_0(%arg0: i32) -> (i32, i32) {
    %c0_i32 = arith.constant 0 : i32
    %c0_i32_0 = arith.constant 0 : i32
    return %c0_i32, %arg0 : i32, i32
  }
  func.func @transform_1(%arg0: i32) -> (i32, i32) {
    %c0_i32 = arith.constant 0 : i32
    %c0_i32_0 = arith.constant 0 : i32
    %c0_i32_1 = arith.constant 0 : i32
    return %c0_i32, %c0_i32_0 : i32, i32
  }
  func.func @transform_2(%arg0: i32) -> (i32, i32) {
    %c0_i32 = arith.constant 0 : i32
    %c0_i32_0 = arith.constant 0 : i32
    %c0_i32_1 = arith.constant 0 : i32
    return %c0_i32, %c0_i32_0 : i32, i32
  }
  func.func @transform_3(%arg0: i32) -> (i32, i32) {
    %c0_i32 = arith.constant 0 : i32
    %c0_i32_0 = arith.constant 0 : i32
    %c0_i32_1 = arith.constant 0 : i32
    return %c0_i32, %c0_i32_0 : i32, i32
  }
  func.func @transform_4(%arg0: i32) -> (i32, i32) {
    %c0_i32 = arith.constant 0 : i32
    %c0_i32_0 = arith.constant 0 : i32
    %c0_i32_1 = arith.constant 0 : i32
    return %c0_i32, %c0_i32_0 : i32, i32
  }
  func.func @transform_5(%arg0: i32) -> (i32, i32) {
    %c0_i32 = arith.constant 0 : i32
    %c0_i32_0 = arith.constant 0 : i32
    return %c0_i32, %arg0 : i32, i32
  }
}

</mosaic_0001>

<llo_original>
// kernel: autoencoder_forward.1
$region0: #{autoencoder_forward.1}
  #allocation0 [shape = 'u32[]', space=smem, size = 0x4, offset = 0x4, fixed_abs, tag = 'smem constant byte address 0x4 - core index']
  #allocation1 [shape = 'u32[144,128]{1,0:T(1,128)}', space=vmem, size = 0x12000, scoped, tag = 'internal scratch']
  %s0 = inlined_call_operand.vmem [shape: bf16[16,8], index: 0, kind: input, shape index: {}]
  %s1 = inlined_call_operand.vmem [shape: bf16[6,16], index: 1, kind: input, shape index: {}]
  %s2 = inlined_call_operand.vmem [shape: f32[6,1], index: 2, kind: input, shape index: {}]
  %s3 = inlined_call_operand.vmem [shape: bf16[16,6], index: 3, kind: input, shape index: {}]
  %s4 = inlined_call_operand.vmem [shape: f32[16,1], index: 4, kind: input, shape index: {}]
  %s5 = inlined_call_operand.vmem [shape: f32[16,8], index: 5, kind: output, shape index: {}]
  %s6 = sld [smem:[#allocation0]]
  $region30: #{autoencoder_forward.1} parent=0
    _
  %s8 = ssub.s32 1, %s6
  %s9 = scalar_select 0, %s8, %s6
  // Predicated region
  $region2: #{autoencoder_forward.1} parent=0 // pred_check
    _
  $region3: #{autoencoder_forward.1} parent=0 // pred_check_branch
    %11 = sbr.rel (0) target = $region5
  $region4: #{autoencoder_forward.1} parent=0 // pred_region
    _
  $region5: #{autoencoder_forward.1} parent=0 // pred_fallthru
    _
  // Predicated region
  $region6: #{autoencoder_forward.1} parent=0 // pred_check
    _
  $region7: #{autoencoder_forward.1} parent=0 // pred_check_branch
    %13 = sbr.rel (0) target = $region9
  $region8: #{autoencoder_forward.1} parent=0 // pred_region
    _
  $region9: #{autoencoder_forward.1} parent=0 // pred_fallthru
    _
  // Predicated region
  $region10: #{autoencoder_forward.1} parent=0 // pred_check
    _
  $region11: #{autoencoder_forward.1} parent=0 // pred_check_branch
    %15 = sbr.rel (0) target = $region13
  $region12: #{autoencoder_forward.1} parent=0 // pred_region
    _
  $region13: #{autoencoder_forward.1} parent=0 // pred_fallthru
    _
  // Predicated region
  $region14: #{autoencoder_forward.1} parent=0 // pred_check
    _
  $region15: #{autoencoder_forward.1} parent=0 // pred_check_branch
    %17 = sbr.rel (0) target = $region17
  $region16: #{autoencoder_forward.1} parent=0 // pred_region
    _
  $region17: #{autoencoder_forward.1} parent=0 // pred_fallthru
    _
  // Predicated region
  $region18: #{autoencoder_forward.1} parent=0 // pred_check
    _
  $region19: #{autoencoder_forward.1} parent=0 // pred_check_branch
    %19 = sbr.rel (0) target = $region21
  $region20: #{autoencoder_forward.1} parent=0 // pred_region
    _
  $region21: #{autoencoder_forward.1} parent=0 // pred_fallthru
    _
  %v21 = vld [vmem:[%s0] sm:$0xf]
  %v22 = vld [vmem:[%s0 + $0x4] sm:$0xf]
  %v23 = vld [vmem:[%s1] sm:$0x7]
  %v24 = vld [vmem:[%s2] sm:$0x3f]
  %26 = vset.pattern.permute.xlu0 0
  %27 = vperm.xlu0 %26, %v24
  %v28 = vpop.permute.xlu0 %27
  %v32 = vunpack.c.l.b16 %v21
  %v33 = vunpack.c.l.b16 %v22
  %v34 = vpack.c.b16 %v33, %v32
  %vm36 = vcmask 130048
  %v38 = vsel %vm36, %v23, 0
  %40 = vmatprep.subr.bf16.mxu0 0
  %41 = vmatpush1.bf16.msra.mxu0 %v34
  %42 = vmatprep.subr.bf16.mxu0 0
  %43 = vmatpush1.bf16.msra.mxu0 0
  %44 = vmatprep.subr.bf16.mxu0 0
  %45 = vmatpush1.bf16.msra.mxu0 0
  %46 = vmatprep.subr.bf16.mxu0 0
  %47 = vmatpush1.bf16.msra.mxu0 0
  %48 = vmatprep.subr.bf16.mxu0 0
  %49 = vmatpush1.bf16.msra.mxu0 0
  %50 = vmatprep.subr.bf16.mxu0 0
  %51 = vmatpush1.bf16.msra.mxu0 0
  %52 = vmatprep.subr.bf16.mxu0 0
  %53 = vmatpush1.bf16.msra.mxu0 0
  %54 = vmatprep.subr.bf16.mxu0 0
  %55 = vmatpush1.bf16.msra.mxu0 0
  %56 = vmatprep.subr.bf16.mxu0 0
  %57 = vmatpush1.bf16.msra.mxu0 0
  %58 = vmatprep.subr.bf16.mxu0 0
  %59 = vmatpush1.bf16.msra.mxu0 0
  %60 = vmatprep.subr.bf16.mxu0 0
  %61 = vmatpush1.bf16.msra.mxu0 0
  %62 = vmatprep.subr.bf16.mxu0 0
  %63 = vmatpush1.bf16.msra.mxu0 0
  %64 = vmatprep.subr.bf16.mxu0 0
  %65 = vmatpush1.bf16.msra.mxu0 0
  %66 = vmatprep.subr.bf16.mxu0 0
  %67 = vmatpush1.bf16.msra.mxu0 0
  %68 = vmatprep.subr.bf16.mxu0 0
  %69 = vmatpush1.bf16.msra.mxu0 0
  %70 = vmatprep.subr.bf16.mxu0 0
  %71 = vmatpush1.bf16.msra.mxu0 0
  %72 = vmatprep.mubr.bf16.mxu0 0
  %73 = vmatmul.mubr.bf16.gmra.mrb[0].mxu0 %v38
  %v74 = vpop.f32.mrb[0].mxu0
  %v75 = vadd.f32 %v28, %v74
  %v76 = vpop.f32.mrb[0].mxu0
  %v77 = vpop.f32.mrb[0].mxu0
  %v78 = vpop.f32.mrb[0].mxu0
  %79 = vdwg.mxu0
  %v80 = vmax.f32 %v75, 0.0
  %v81 = vld [vmem:[%s3] sm:$0xf]
  %v82 = vld [vmem:[%s3 + $0x4] sm:$0xf]
  %v83 = vpack.c.bf16 %v80, %v80
  %v84 = vld [vmem:[%s4] sm:$0xff]
  %v85 = vld [vmem:[%s4 + $0x8] sm:$0xff]
  %87 = vset.pattern.permute.xlu0 0
  %88 = vperm.xlu0 %87, %v84
  %v89 = vpop.permute.xlu0 %88
  %92 = vset.pattern.permute.xlu0 0
  %93 = vperm.xlu0 %92, %v85
  %v94 = vpop.permute.xlu0 %93
  %v98 = vunpack.c.l.b16 %v81
  %v99 = vunpack.c.l.b16 %v82
  %v100 = vpack.c.b16 %v99, %v98
  %vm101 = vcmask 48128
  %v103 = vsel %vm101, %v100, 0
  %vm105 = vcmask 1042432
  %v107 = vsel %vm105, %v83, 0
  %109 = vmatprep.subr.bf16.mxu0 0
  %110 = vmatpush1.bf16.msra.mxu0 %v107
  %111 = vmatprep.subr.bf16.mxu0 0
  %112 = vmatpush1.bf16.msra.mxu0 0
  %113 = vmatprep.subr.bf16.mxu0 0
  %114 = vmatpush1.bf16.msra.mxu0 0
  %115 = vmatprep.subr.bf16.mxu0 0
  %116 = vmatpush1.bf16.msra.mxu0 0
  %117 = vmatprep.subr.bf16.mxu0 0
  %118 = vmatpush1.bf16.msra.mxu0 0
  %119 = vmatprep.subr.bf16.mxu0 0
  %120 = vmatpush1.bf16.msra.mxu0 0
  %121 = vmatprep.subr.bf16.mxu0 0
  %122 = vmatpush1.bf16.msra.mxu0 0
  %123 = vmatprep.subr.bf16.mxu0 0
  %124 = vmatpush1.bf16.msra.mxu0 0
  %125 = vmatprep.subr.bf16.mxu0 0
  %126 = vmatpush1.bf16.msra.mxu0 0
  %127 = vmatprep.subr.bf16.mxu0 0
  %128 = vmatpush1.bf16.msra.mxu0 0
  %129 = vmatprep.subr.bf16.mxu0 0
  %130 = vmatpush1.bf16.msra.mxu0 0
  %131 = vmatprep.subr.bf16.mxu0 0
  %132 = vmatpush1.bf16.msra.mxu0 0
  %133 = vmatprep.subr.bf16.mxu0 0
  %134 = vmatpush1.bf16.msra.mxu0 0
  %135 = vmatprep.subr.bf16.mxu0 0
  %136 = vmatpush1.bf16.msra.mxu0 0
  %137 = vmatprep.subr.bf16.mxu0 0
  %138 = vmatpush1.bf16.msra.mxu0 0
  %139 = vmatprep.subr.bf16.mxu0 0
  %140 = vmatpush1.bf16.msra.mxu0 0
  %141 = vmatprep.mubr.bf16.mxu0 0
  %142 = vmatmul.mubr.bf16.gmra.mrb[0].mxu0 %v103
  %v143 = vpop.f32.mrb[0].mxu0
  %v144 = vadd.f32 %v89, %v143
  %v145 = vpop.f32.mrb[0].mxu0
  %v146 = vpop.f32.mrb[0].mxu0
  %v147 = vadd.f32 %v94, %v146
  %v148 = vpop.f32.mrb[0].mxu0
  %149 = vdwg.mxu0
  %v150 = vsub.f32 0.0, %v144
  %v151 = vsub.f32 0.0, %v147
  %v152 = vmul.f32 %v150, 1.442695
  %v153 = vpow.pop %v152
  %v154 = vmul.f32 %v151, 1.442695
  %v155 = vpow.pop %v154
  %v156 = vadd.f32 %v153, 1.0
  %v157 = vadd.f32 %v155, 1.0
  %v158 = vrcp.pop %v156
  %v159 = vrcp.pop %v157
  %vm160 = vcmask 64512
  %161 = vst.msk [vmem:[%s5] sm:$0xff] %vm160, %v158
  %162 = vst.msk [vmem:[%s5 + $0x8] sm:$0xff] %vm160, %v159
  // Predicated region
  $region22: #{autoencoder_forward.1} parent=0 // pred_check
    _
  $region23: #{autoencoder_forward.1} parent=0 // pred_check_branch
    %164 = sbr.rel (0) target = $region25
  $region24: #{autoencoder_forward.1} parent=0 // pred_region
    _
  $region25: #{autoencoder_forward.1} parent=0 // pred_fallthru
    _
  // Predicated region
  $region26: #{autoencoder_forward.1} parent=0 // pred_check
    _
  $region27: #{autoencoder_forward.1} parent=0 // pred_check_branch
    %166 = sbr.rel (0) target = $region29
  $region28: #{autoencoder_forward.1} parent=0 // pred_region
    _
  $region29: #{autoencoder_forward.1} parent=0 // pred_fallthru
    _

</llo_original>
